<compile_context>
chip_gen: v7x
topology: tpu7x:2x2x1
jax: 0.10.0
libtpu: 0.0.40
codegen_flags: <defaults>
</compile_context>

<pallas_src>
import jax
import jax.numpy as jnp
from jax.experimental import pallas as pl
from jax.experimental.pallas import tpu as pltpu

# hyper-parameters from the module
BLOCK_SIZE = 32
N_EMBED = 128
HEAD_SIZE = 16
NEG_INF = -1e30   # large finite negative: avoids inf-inf NaN edge cases


def head_kernel(x_ref, wqkv_ref, o_ref):
    """Causal single-head attention for the whole batch in one invocation.

    x_ref:    (B, T, C)   float32
    wqkv_ref: (C, 3*C)    bfloat16  -- [Wq*scale | pad | Wk | pad | Wv | pad],
                                       each projection starting at a 128-lane
                                       tile boundary.
    o_ref:    (B, T, HS)  float32
    """
    B, T, C = x_ref.shape

    # --- fused QKV projection -------------------------------------------------
    # Flatten (B,T) -> rows (sublane-only reshape, free for T % 8 == 0) so the
    # projection is a single (B*T, C) x (C, 3C) MXU matmul.
    x2d = x_ref[...].reshape(B * T, C).astype(jnp.bfloat16)
    qkv = jnp.dot(x2d, wqkv_ref[...],
                  preferred_element_type=jnp.float32)          # (B*T, 3C) f32
    qkv = qkv.reshape(B, T, 3 * C)

    # Tile-aligned slices (lane offsets 0 / 128 / 256): no cross-lane work.
    # q and k stay 128 lanes wide (zero-padded beyond HEAD_SIZE) so QK^T
    # contracts over a full 128-lane K; the zero columns contribute nothing.
    q = qkv[:, :, 0:C]
    k = qkv[:, :, C:2 * C]
    v = qkv[:, :, 2 * C:2 * C + HEAD_SIZE]

    # --- attention scores (n_embed**-0.5 already folded into Wq) ---------------
    wei = jnp.einsum("btd,bsd->bts",
                     q.astype(jnp.bfloat16), k.astype(jnp.bfloat16),
                     preferred_element_type=jnp.float32)       # (B, T, T) f32

    # causal mask (tril) with a large finite negative instead of -inf
    row = jax.lax.broadcasted_iota(jnp.int32, (B, T, T), 1)
    col = jax.lax.broadcasted_iota(jnp.int32, (B, T, T), 2)
    wei = jnp.where(col <= row, wei, jnp.float32(NEG_INF))

    # numerically stable softmax in f32; reciprocal on the EUP (free slot)
    m = jnp.max(wei, axis=-1, keepdims=True)
    p = jnp.exp(wei - m)
    p = p * pl.reciprocal(jnp.sum(p, axis=-1, keepdims=True), approx=True)

    # TODO(synk): attention-weight dropout (p=0.1) skipped — identity in eval mode.
    out = jnp.einsum("bts,bsd->btd",
                     p.astype(jnp.bfloat16), v.astype(jnp.bfloat16),
                     preferred_element_type=jnp.float32)       # (B, T, HS) f32
    o_ref[...] = out.astype(o_ref.dtype)


def head_forward(x, wq, wk, wv):
    """x: (B, T, C) f32; wq/wk/wv: (C, HS) f32 (pre-transposed nn.Linear weights)."""
    B, T, C = x.shape
    assert C == N_EMBED and T <= BLOCK_SIZE

    # --- weight prep (done once; in a real model this is pre-fused) ------------
    # Fold the attention scale into Wq, pad each projection out to a full
    # 128-lane tile so the in-kernel q/k/v slices are lane-tile aligned, and
    # cast the MXU operand to bf16.
    scale = jnp.float32(C) ** -0.5
    pad = jnp.zeros((C, C - HEAD_SIZE), jnp.float32)
    wqkv = jnp.concatenate(
        [wq * scale, pad, wk, pad, wv, pad], axis=1).astype(jnp.bfloat16)  # (C, 3C)

    return pl.pallas_call(
        head_kernel,
        out_shape=jax.ShapeDtypeStruct((B, T, HEAD_SIZE), jnp.float32),
        grid_spec=pltpu.PrefetchScalarGridSpec(
            num_scalar_prefetch=0,
            # Whole problem in a single invocation: at B=2 the per-grid-step
            # overhead (~0.35us + DMA latency) dwarfs the compute, so one call
            # beats a B-long grid on every generation.
            grid=(1,),
            in_specs=[
                pl.BlockSpec((B, T, C), lambda i: (0, 0, 0)),
                pl.BlockSpec((C, 3 * C), lambda i: (0, 0)),
            ],
            out_specs=pl.BlockSpec((B, T, HEAD_SIZE), lambda i: (0, 0, 0)),
        ),
        compiler_params=pltpu.CompilerParams(
            dimension_semantics=("arbitrary",)),
    )(x, wqkv)


def head_reference(x, wq, wk, wv):
    """Pure-JAX f32 reference matching the PyTorch Head forward (eval mode)."""
    q = x @ wq
    k = x @ wk
    v = x @ wv
    T = x.shape[1]
    wei = jnp.einsum("btd,bsd->bts", q, k) * (N_EMBED ** -0.5)
    mask = jnp.tril(jnp.ones((T, T), dtype=bool))
    wei = jnp.where(mask, wei, -jnp.inf)
    wei = jax.nn.softmax(wei, axis=-1)
    return jnp.einsum("bts,bsd->btd", wei, v)


if __name__ == "__main__":
    B, T = 2, BLOCK_SIZE   # T = block_size = 32, n_embed fixed at 128
    key = jax.random.PRNGKey(0)
    kx, kq, kk, kv = jax.random.split(key, 4)

    x = jax.random.normal(kx, (B, T, N_EMBED), jnp.float32)
    # nn.Linear(n_embed, head_size, bias=False) weights, stored pre-transposed
    # as (n_embed, head_size) so the kernel computes x @ W directly.
    wq = 0.02 * jax.random.normal(kq, (N_EMBED, HEAD_SIZE), jnp.float32)
    wk = 0.02 * jax.random.normal(kk, (N_EMBED, HEAD_SIZE), jnp.float32)
    wv = 0.02 * jax.random.normal(kv, (N_EMBED, HEAD_SIZE), jnp.float32)

    y = head_forward(x, wq, wk, wv)
    jax.block_until_ready(y)

    assert y.shape == (B, T, HEAD_SIZE)
    assert bool(jnp.all(jnp.isfinite(y)))

    # bf16 MXU operands + f32 accumulation + approx reciprocal: compare against
    # the f32 reference with a tolerance that comfortably covers bf16 rounding.
    y_ref = head_reference(x, wq, wk, wv)
    max_err = float(jnp.max(jnp.abs(y - y_ref)))
    assert max_err < 2e-2, f"max abs err {max_err}"

    print("KERNEL_OK")
</pallas_src>

<mosaic_0001>
module attributes {stable_mosaic.version = 11 : i64} {
  func.func @head_kernel(%arg0: i32, %arg1: memref<2x32x128xf32, #tpu.memory_space<vmem>>, %arg2: memref<128x384xbf16, #tpu.memory_space<vmem>>, %arg3: memref<2x32x16xf32, #tpu.memory_space<vmem>>) attributes {dimension_semantics = [#tpu.dimension_semantics<arbitrary>], iteration_bounds = array<i64: 1>, scalar_prefetch = 0 : i64, scratch_operands = 0 : i64, tpu.core_type = #tpu.core_type<tc>, window_params = [{pipeline_mode = #tpu.pipeline_mode<synchronous>, transform_indices = @transform_0, window_bounds = array<i64: 2, 32, 128>}, {pipeline_mode = #tpu.pipeline_mode<synchronous>, transform_indices = @transform_1, window_bounds = array<i64: 128, 384>}, {pipeline_mode = #tpu.pipeline_mode<synchronous>, transform_indices = @transform_2, window_bounds = array<i64: 2, 32, 16>}]} {
    %c0 = arith.constant 0 : index
    %c0_0 = arith.constant 0 : index
    %c0_1 = arith.constant 0 : index
    %0 = vector.load %arg1[%c0, %c0_0, %c0_1] : memref<2x32x128xf32, #tpu.memory_space<vmem>>, vector<2x32x128xf32>
    %1 = vector.shape_cast %0 : vector<2x32x128xf32> to vector<64x128xf32>
    %2 = arith.truncf %1 : vector<64x128xf32> to vector<64x128xbf16>
    %c0_2 = arith.constant 0 : index
    %c0_3 = arith.constant 0 : index
    %3 = vector.load %arg2[%c0_2, %c0_3] : memref<128x384xbf16, #tpu.memory_space<vmem>>, vector<128x384xbf16>
    %cst = arith.constant dense<0.000000e+00> : vector<64x384xf32>
    %4 = tpu.matmul %2, %3, %cst {dimension_numbers = #tpu.dot_dimension_numbers<[1], [0], [0], [1], [0, 0, 1, 1], [], []>} : vector<64x128xbf16>, vector<128x384xbf16>, vector<64x384xf32> -> vector<64x384xf32>
    %5 = vector.shape_cast %4 : vector<64x384xf32> to vector<2x32x384xf32>
    %6 = vector.extract_strided_slice %5 {offsets = [0, 0, 0], sizes = [2, 32, 128], strides = [1, 1, 1]} : vector<2x32x384xf32> to vector<2x32x128xf32>
    %7 = vector.extract_strided_slice %5 {offsets = [0, 0, 128], sizes = [2, 32, 128], strides = [1, 1, 1]} : vector<2x32x384xf32> to vector<2x32x128xf32>
    %8 = vector.extract_strided_slice %5 {offsets = [0, 0, 256], sizes = [2, 32, 16], strides = [1, 1, 1]} : vector<2x32x384xf32> to vector<2x32x16xf32>
    %9 = arith.truncf %6 : vector<2x32x128xf32> to vector<2x32x128xbf16>
    %10 = arith.truncf %7 : vector<2x32x128xf32> to vector<2x32x128xbf16>
    "tpu.trace_start"() <{level = 10 : i32, message = "btd,bsd->bts"}> : () -> ()
    %cst_4 = arith.constant dense<0.000000e+00> : vector<2x32x32xf32>
    %11 = tpu.matmul %9, %10, %cst_4 {dimension_numbers = #tpu.dot_dimension_numbers<[2], [2], [1], [1], [0, 0, 0, 1, 1, 1], [0], [0]>} : vector<2x32x128xbf16>, vector<2x32x128xbf16>, vector<2x32x32xf32> -> vector<2x32x32xf32>
    "tpu.trace_stop"() : () -> ()
    %12 = tpu.iota {dimensions = array<i32: 1>} : vector<2x32x32xi32>
    %13 = tpu.iota {dimensions = array<i32: 2>} : vector<2x32x32xi32>
    %14 = arith.cmpi sle, %13, %12 : vector<2x32x32xi32>
    %cst_5 = arith.constant -1.000000e+30 : f32
    %15 = vector.broadcast %cst_5 : f32 to vector<2x32x32xf32>
    %16 = arith.select %14, %11, %15 : vector<2x32x32xi1>, vector<2x32x32xf32>
    %cst_6 = arith.constant dense<0xFF800000> : vector<2x32xf32>
    %17 = vector.multi_reduction <maximumf>, %16, %cst_6 [2] : vector<2x32x32xf32> to vector<2x32xf32>
    %18 = vector.shape_cast %17 : vector<2x32xf32> to vector<2x32x1xf32>
    %19 = vector.broadcast %18 : vector<2x32x1xf32> to vector<2x32x32xf32>
    %20 = arith.subf %16, %19 : vector<2x32x32xf32>
    %21 = math.exp %20 : vector<2x32x32xf32>
    %cst_7 = arith.constant dense<0.000000e+00> : vector<2x32xf32>
    %22 = vector.multi_reduction <add>, %21, %cst_7 [2] : vector<2x32x32xf32> to vector<2x32xf32>
    %23 = vector.shape_cast %22 : vector<2x32xf32> to vector<2x32x1xf32>
    %24 = tpu.reciprocal %23 {approx = true} : vector<2x32x1xf32> -> vector<2x32x1xf32>
    %25 = vector.broadcast %24 : vector<2x32x1xf32> to vector<2x32x32xf32>
    %26 = arith.mulf %21, %25 : vector<2x32x32xf32>
    %27 = arith.truncf %26 : vector<2x32x32xf32> to vector<2x32x32xbf16>
    %28 = arith.truncf %8 : vector<2x32x16xf32> to vector<2x32x16xbf16>
    "tpu.trace_start"() <{level = 10 : i32, message = "bts,bsd->btd"}> : () -> ()
    %cst_8 = arith.constant dense<0.000000e+00> : vector<2x32x16xf32>
    %29 = tpu.matmul %27, %28, %cst_8 {dimension_numbers = #tpu.dot_dimension_numbers<[2], [1], [1], [2], [0, 0, 0, 1, 1, 2], [0], [0]>} : vector<2x32x32xbf16>, vector<2x32x16xbf16>, vector<2x32x16xf32> -> vector<2x32x16xf32>
    "tpu.trace_stop"() : () -> ()
    %c0_9 = arith.constant 0 : index
    %c0_10 = arith.constant 0 : index
    %c0_11 = arith.constant 0 : index
    %30 = vector.load %arg3[%c0_9, %c0_10, %c0_11] : memref<2x32x16xf32, #tpu.memory_space<vmem>>, vector<2x32x16xf32>
    tpu.vector_store %arg3[%c0_9, %c0_10, %c0_11], %29 {strides = array<i32>} : memref<2x32x16xf32, #tpu.memory_space<vmem>>, vector<2x32x16xf32>,
    return
  }
  func.func @transform_0(%arg0: i32) -> (i32, i32, i32) {
    %c0_i32 = arith.constant 0 : i32
    %c0_i32_0 = arith.constant 0 : i32
    %c0_i32_1 = arith.constant 0 : i32
    %c0_i32_2 = arith.constant 0 : i32
    return %c0_i32, %c0_i32_0, %c0_i32_1 : i32, i32, i32
  }
  func.func @transform_1(%arg0: i32) -> (i32, i32) {
    %c0_i32 = arith.constant 0 : i32
    %c0_i32_0 = arith.constant 0 : i32
    %c0_i32_1 = arith.constant 0 : i32
    return %c0_i32, %c0_i32_0 : i32, i32
  }
  func.func @transform_2(%arg0: i32) -> (i32, i32, i32) {
    %c0_i32 = arith.constant 0 : i32
    %c0_i32_0 = arith.constant 0 : i32
    %c0_i32_1 = arith.constant 0 : i32
    %c0_i32_2 = arith.constant 0 : i32
    return %c0_i32, %c0_i32_0, %c0_i32_1 : i32, i32, i32
  }
}

</mosaic_0001>

<llo_original>
// kernel: tpu_custom_call.1
$region0: #{tpu_custom_call.1}
  #allocation0 [shape = 'u32[]', space=smem, size = 0x4, offset = 0x4, fixed_abs, tag = 'smem constant byte address 0x4 - core index']
  #allocation1 [shape = 'u32[144,128]{1,0:T(1,128)}', space=vmem, size = 0x12000, scoped, tag = 'internal scratch']
  %s0 = inlined_call_operand.hbm [shape: f32[2,32,128], index: 0, kind: input, shape index: {}]
  %s1 = inlined_call_operand.hbm [shape: bf16[128,384], index: 1, kind: input, shape index: {}]
  %s2 = inlined_call_operand.vmem [shape: f32[2,32,16], index: 2, kind: output, shape index: {}]
  %s3 = sld [smem:[#allocation0]]
  $region26: #{tpu_custom_call.1} parent=0
    _
  %s5 = ssub.s32 1, %s3
  %s6 = scalar_select 0, %s5, %s3
  $region1: #{tpu_custom_call.1} parent=0
    #allocation2 [shape = 'u8[32768]{0}', space=vmem, size = 0x8000, scoped, tag = 'input window, operand 0, single buffered']
    #allocation3 [shape = 's32[1]{0}', space=sflag, size = 0x4, scoped, tag = 'scoped memory for tpu_custom_call.1']
    #allocation4 [shape = 'u8[98304]{0}', space=vmem, size = 0x18000, scoped, tag = 'input window, operand 1, single buffered']
    #allocation5 [shape = 's32[1]{0}', space=sflag, size = 0x4, scoped, tag = 'scoped memory for tpu_custom_call.1']
    %7 = vsyncpa [#allocation3], 0
    %8 = vsyncpa [#allocation5], 0
    // Predicated region
    $region2: #{tpu_custom_call.1} parent=1 // pred_check
      _
    $region3: #{tpu_custom_call.1} parent=1 // pred_check_branch
      %10 = sbr.rel (0) target = $region5
    $region4: #{tpu_custom_call.1} parent=1 // pred_region
      %s12 = ssub.s32 1024, 1024
      %13 = vsyncadd [#allocation3], %s12
      %s14 = sshll.u32 [#allocation2], 4
      %s15 = int_to_ptr.vmem [resolvable:$true] %s14
      %20 = dma.hbm_to_vmem [thread:$0]  %s0, 1024, %s15, [#allocation3], 128, 128, 8
    $region5: #{tpu_custom_call.1} parent=1 // pred_fallthru
      _
    // Predicated region
    $region6: #{tpu_custom_call.1} parent=1 // pred_check
      _
    $region7: #{tpu_custom_call.1} parent=1 // pred_check_branch
      %22 = sbr.rel (0) target = $region9
    $region8: #{tpu_custom_call.1} parent=1 // pred_region
      %s24 = ssub.s32 3072, 3072
      %25 = vsyncadd [#allocation5], %s24
      %s26 = sshll.u32 [#allocation4], 4
      %s27 = int_to_ptr.vmem [resolvable:$true] %s26
      %32 = dma.hbm_to_vmem [thread:$0]  %s1, 3072, %s27, [#allocation5], 192, 192, 12
    $region9: #{tpu_custom_call.1} parent=1 // pred_fallthru
      _
    // Predicated region
    $region10: #{tpu_custom_call.1} parent=1 // pred_check
      _
    $region11: #{tpu_custom_call.1} parent=1 // pred_check_branch
      %34 = sbr.rel (0) target = $region13
    $region12: #{tpu_custom_call.1} parent=1 // pred_region
      %35 = dma.done [#allocation3], 1024
    $region13: #{tpu_custom_call.1} parent=1 // pred_fallthru
      _
    // Predicated region
    $region14: #{tpu_custom_call.1} parent=1 // pred_check
      _
    $region15: #{tpu_custom_call.1} parent=1 // pred_check_branch
      %37 = sbr.rel (0) target = $region17
    $region16: #{tpu_custom_call.1} parent=1 // pred_region
      %38 = dma.done [#allocation5], 3072
    $region17: #{tpu_custom_call.1} parent=1 // pred_fallthru
      _
    %v40 = vld [vmem:[#allocation2] sm:$0xff]
    %v41 = vld [vmem:[#allocation2 + $0x8] sm:$0xff]
    %v42 = vld [vmem:[#allocation2 + $0x10] sm:$0xff]
    %v43 = vld [vmem:[#allocation2 + $0x18] sm:$0xff]
    %v44 = vld [vmem:[#allocation2 + $0x20] sm:$0xff]
    %v45 = vld [vmem:[#allocation2 + $0x28] sm:$0xff]
    %v46 = vld [vmem:[#allocation2 + $0x30] sm:$0xff]
    %v47 = vld [vmem:[#allocation2 + $0x38] sm:$0xff]
    %v48 = vpack.c.bf16 %v41, %v40
    %v49 = vpack.c.bf16 %v43, %v42
    %v50 = vpack.c.bf16 %v45, %v44
    %v51 = vpack.c.bf16 %v47, %v46
    %v52 = vld [vmem:[#allocation4] sm:$0xff]
    %v53 = vld [vmem:[#allocation4 + $0x8] sm:$0xf]
    %v54 = vld [vmem:[#allocation4 + $0xc] sm:$0xff]
    %v55 = vld [vmem:[#allocation4 + $0x14] sm:$0xf]
    %v56 = vld [vmem:[#allocation4 + $0x18] sm:$0xff]
    %v57 = vld [vmem:[#allocation4 + $0x20] sm:$0xf]
    %v58 = vld [vmem:[#allocation4 + $0x24] sm:$0xff]
    %v59 = vld [vmem:[#allocation4 + $0x2c] sm:$0xf]
    %v60 = vld [vmem:[#allocation4 + $0x30] sm:$0xff]
    %v61 = vld [vmem:[#allocation4 + $0x38] sm:$0xf]
    %v62 = vld [vmem:[#allocation4 + $0x3c] sm:$0xff]
    %v63 = vld [vmem:[#allocation4 + $0x44] sm:$0xf]
    %v64 = vld [vmem:[#allocation4 + $0x48] sm:$0xff]
    %v65 = vld [vmem:[#allocation4 + $0x50] sm:$0xf]
    %v66 = vld [vmem:[#allocation4 + $0x54] sm:$0xff]
    %v67 = vld [vmem:[#allocation4 + $0x5c] sm:$0xf]
    %v68 = vld [vmem:[#allocation4 + $0x60] sm:$0xff]
    %v69 = vld [vmem:[#allocation4 + $0x68] sm:$0xf]
    %v70 = vld [vmem:[#allocation4 + $0x6c] sm:$0xff]
    %v71 = vld [vmem:[#allocation4 + $0x74] sm:$0xf]
    %v72 = vld [vmem:[#allocation4 + $0x78] sm:$0xff]
    %v73 = vld [vmem:[#allocation4 + $0x80] sm:$0xf]
    %v74 = vld [vmem:[#allocation4 + $0x84] sm:$0xff]
    %v75 = vld [vmem:[#allocation4 + $0x8c] sm:$0xf]
    %v76 = vld [vmem:[#allocation4 + $0x90] sm:$0xff]
    %v77 = vld [vmem:[#allocation4 + $0x98] sm:$0xf]
    %v78 = vld [vmem:[#allocation4 + $0x9c] sm:$0xff]
    %v79 = vld [vmem:[#allocation4 + $0xa4] sm:$0xf]
    %v80 = vld [vmem:[#allocation4 + $0xa8] sm:$0xff]
    %v81 = vld [vmem:[#allocation4 + $0xb0] sm:$0xf]
    %v82 = vld [vmem:[#allocation4 + $0xb4] sm:$0xff]
    %v83 = vld [vmem:[#allocation4 + $0xbc] sm:$0xf]
    %v116 = vunpack.c.l.b16 %v52
    %v117 = vunpack.c.h.b16 %v52
    %v118 = vunpack.c.l.b16 %v53
    %v119 = vunpack.c.l.b16 %v54
    %v120 = vunpack.c.h.b16 %v54
    %v121 = vunpack.c.l.b16 %v55
    %v122 = vunpack.c.l.b16 %v56
    %v123 = vunpack.c.h.b16 %v56
    %v124 = vunpack.c.l.b16 %v57
    %v125 = vunpack.c.l.b16 %v58
    %v126 = vunpack.c.h.b16 %v58
    %v127 = vunpack.c.l.b16 %v59
    %v128 = vunpack.c.l.b16 %v60
    %v129 = vunpack.c.h.b16 %v60
    %v130 = vunpack.c.l.b16 %v61
    %v131 = vunpack.c.l.b16 %v62
    %v132 = vunpack.c.h.b16 %v62
    %v133 = vunpack.c.l.b16 %v63
    %v134 = vunpack.c.l.b16 %v64
    %v135 = vunpack.c.h.b16 %v64
    %v136 = vunpack.c.l.b16 %v65
    %v137 = vunpack.c.l.b16 %v66
    %v138 = vunpack.c.h.b16 %v66
    %v139 = vunpack.c.l.b16 %v67
    %v140 = vunpack.c.l.b16 %v68
    %v141 = vunpack.c.h.b16 %v68
    %v142 = vunpack.c.l.b16 %v69
    %v143 = vunpack.c.l.b16 %v70
    %v144 = vunpack.c.h.b16 %v70
    %v145 = vunpack.c.l.b16 %v71
    %v146 = vunpack.c.l.b16 %v72
    %v147 = vunpack.c.h.b16 %v72
    %v148 = vunpack.c.l.b16 %v73
    %v149 = vunpack.c.l.b16 %v74
    %v150 = vunpack.c.h.b16 %v74
    %v151 = vunpack.c.l.b16 %v75
    %v152 = vunpack.c.l.b16 %v76
    %v153 = vunpack.c.h.b16 %v76
    %v154 = vunpack.c.l.b16 %v77
    %v155 = vunpack.c.l.b16 %v78
    %v156 = vunpack.c.h.b16 %v78
    %v157 = vunpack.c.l.b16 %v79
    %v158 = vunpack.c.l.b16 %v80
    %v159 = vunpack.c.h.b16 %v80
    %v160 = vunpack.c.l.b16 %v81
    %v161 = vunpack.c.l.b16 %v82
    %v162 = vunpack.c.h.b16 %v82
    %v163 = vunpack.c.l.b16 %v83
    %v164 = vpack.c.b16 %v119, %v116
    %v165 = vpack.c.b16 %v120, %v117
    %v166 = vpack.c.b16 %v121, %v118
    %v167 = vpack.c.b16 %v125, %v122
    %v168 = vpack.c.b16 %v126, %v123
    %v169 = vpack.c.b16 %v127, %v124
    %v170 = vpack.c.b16 %v131, %v128
    %v171 = vpack.c.b16 %v132, %v129
    %v172 = vpack.c.b16 %v133, %v130
    %v173 = vpack.c.b16 %v137, %v134
    %v174 = vpack.c.b16 %v138, %v135
    %v175 = vpack.c.b16 %v139, %v136
    %v176 = vpack.c.b16 %v143, %v140
    %v177 = vpack.c.b16 %v144, %v141
    %v178 = vpack.c.b16 %v145, %v142
    %v179 = vpack.c.b16 %v149, %v146
    %v180 = vpack.c.b16 %v150, %v147
    %v181 = vpack.c.b16 %v151, %v148
    %v182 = vpack.c.b16 %v155, %v152
    %v183 = vpack.c.b16 %v156, %v153
    %v184 = vpack.c.b16 %v157, %v154
    %v185 = vpack.c.b16 %v161, %v158
    %v186 = vpack.c.b16 %v162, %v159
    %v187 = vpack.c.b16 %v163, %v160
    %212 = vmatprep.subr.bf16.mxu0 %v165
    %213 = vmatpush1.bf16.msra.mxu0 %v164
    %214 = vmatprep.subr.bf16.mxu0 %v168
    %215 = vmatpush1.bf16.msra.mxu0 %v167
    %216 = vmatprep.subr.bf16.mxu0 %v171
    %217 = vmatpush1.bf16.msra.mxu0 %v170
    %218 = vmatprep.subr.bf16.mxu0 %v174
    %219 = vmatpush1.bf16.msra.mxu0 %v173
    %220 = vmatprep.subr.bf16.mxu0 %v177
    %221 = vmatpush1.bf16.msra.mxu0 %v176
    %222 = vmatprep.subr.bf16.mxu0 %v180
    %223 = vmatpush1.bf16.msra.mxu0 %v179
    %224 = vmatprep.subr.bf16.mxu0 %v183
    %225 = vmatpush1.bf16.msra.mxu0 %v182
    %226 = vmatprep.subr.bf16.mxu0 %v186
    %227 = vmatpush1.bf16.msra.mxu0 %v185
    %228 = vmatprep.subr.bf16.mxu0 0
    %229 = vmatpush1.bf16.msra.mxu0 0
    %230 = vmatprep.subr.bf16.mxu0 0
    %231 = vmatpush1.bf16.msra.mxu0 0
    %232 = vmatprep.subr.bf16.mxu0 0
    %233 = vmatpush1.bf16.msra.mxu0 0
    %234 = vmatprep.subr.bf16.mxu0 0
    %235 = vmatpush1.bf16.msra.mxu0 0
    %236 = vmatprep.subr.bf16.mxu0 0
    %237 = vmatpush1.bf16.msra.mxu0 0
    %238 = vmatprep.subr.bf16.mxu0 0
    %239 = vmatpush1.bf16.msra.mxu0 0
    %240 = vmatprep.subr.bf16.mxu0 0
    %241 = vmatpush1.bf16.msra.mxu0 0
    %242 = vmatprep.subr.bf16.mxu0 0
    %243 = vmatpush1.bf16.msra.mxu0 0
    %244 = vmatprep.mubr.bf16.mxu0 0
    %245 = vmatmul.mubr.bf16.gmra.mrb[0].mxu0 %v48
    %v246 = vpop.f32.mrb[0].mxu0
    %v247 = vadd.f32 0.0, %v246
    %v248 = vpop.f32.mrb[0].mxu0
    %v249 = vadd.f32 0.0, %v248
    %v250 = vpop.f32.mrb[0].mxu0
    %v251 = vadd.f32 0.0, %v250
    %v252 = vpop.f32.mrb[0].mxu0
    %v253 = vadd.f32 0.0, %v252
    %254 = vmatprep.mubr.bf16.mxu0 0
    %255 = vmatmul.mubr.bf16.gmra.mrb[0].mxu0 %v49
    %v256 = vpop.f32.mrb[0].mxu0
    %v257 = vadd.f32 0.0, %v256
    %v258 = vpop.f32.mrb[0].mxu0
    %v259 = vadd.f32 0.0, %v258
    %v260 = vpop.f32.mrb[0].mxu0
    %v261 = vadd.f32 0.0, %v260
    %v262 = vpop.f32.mrb[0].mxu0
    %v263 = vadd.f32 0.0, %v262
    %264 = vmatprep.mubr.bf16.mxu0 0
    %265 = vmatmul.mubr.bf16.gmra.mrb[0].mxu0 %v50
    %v266 = vpop.f32.mrb[0].mxu0
    %v267 = vadd.f32 0.0, %v266
    %v268 = vpop.f32.mrb[0].mxu0
    %v269 = vadd.f32 0.0, %v268
    %v270 = vpop.f32.mrb[0].mxu0
    %v271 = vadd.f32 0.0, %v270
    %v272 = vpop.f32.mrb[0].mxu0
    %v273 = vadd.f32 0.0, %v272
    %274 = vmatprep.mubr.bf16.mxu0 0
    %275 = vmatmul.mubr.bf16.gmra.mrb[0].mxu0 %v51
    %v276 = vpop.f32.mrb[0].mxu0
    %v277 = vadd.f32 0.0, %v276
    %v278 = vpop.f32.mrb[0].mxu0
    %v279 = vadd.f32 0.0, %v278
    %v280 = vpop.f32.mrb[0].mxu0
    %v281 = vadd.f32 0.0, %v280
    %v282 = vpop.f32.mrb[0].mxu0
    %v283 = vadd.f32 0.0, %v282
    %284 = vdwg.mxu0
    %285 = vmatprep.subr.bf16.mxu0 0
    %286 = vmatpush1.bf16.msra.mxu0 %v166
    %287 = vmatprep.subr.bf16.mxu0 0
    %288 = vmatpush1.bf16.msra.mxu0 %v169
    %289 = vmatprep.subr.bf16.mxu0 0
    %290 = vmatpush1.bf16.msra.mxu0 %v172
    %291 = vmatprep.subr.bf16.mxu0 0
    %292 = vmatpush1.bf16.msra.mxu0 %v175
    %293 = vmatprep.subr.bf16.mxu0 0
    %294 = vmatpush1.bf16.msra.mxu0 %v178
    %295 = vmatprep.subr.bf16.mxu0 0
    %296 = vmatpush1.bf16.msra.mxu0 %v181
    %297 = vmatprep.subr.bf16.mxu0 0
    %298 = vmatpush1.bf16.msra.mxu0 %v184
    %299 = vmatprep.subr.bf16.mxu0 0
    %300 = vmatpush1.bf16.msra.mxu0 %v187
    %301 = vmatprep.subr.bf16.mxu0 0
    %302 = vmatpush1.bf16.msra.mxu0 0
    %303 = vmatprep.subr.bf16.mxu0 0
    %304 = vmatpush1.bf16.msra.mxu0 0
    %305 = vmatprep.subr.bf16.mxu0 0
    %306 = vmatpush1.bf16.msra.mxu0 0
    %307 = vmatprep.subr.bf16.mxu0 0
    %308 = vmatpush1.bf16.msra.mxu0 0
    %309 = vmatprep.subr.bf16.mxu0 0
    %310 = vmatpush1.bf16.msra.mxu0 0
    %311 = vmatprep.subr.bf16.mxu0 0
    %312 = vmatpush1.bf16.msra.mxu0 0
    %313 = vmatprep.subr.bf16.mxu0 0
    %314 = vmatpush1.bf16.msra.mxu0 0
    %315 = vmatprep.subr.bf16.mxu0 0
    %316 = vmatpush1.bf16.msra.mxu0 0
    %317 = vmatprep.mubr.bf16.mxu0 0
    %318 = vmatmul.mubr.bf16.gmra.mrb[0].mxu0 %v48
    %v319 = vpop.f32.mrb[0].mxu0
    %v320 = vadd.f32 0.0, %v319
    %v321 = vpop.f32.mrb[0].mxu0
    %v322 = vpop.f32.mrb[0].mxu0
    %v323 = vadd.f32 0.0, %v322
    %v324 = vpop.f32.mrb[0].mxu0
    %325 = vmatprep.mubr.bf16.mxu0 0
    %326 = vmatmul.mubr.bf16.gmra.mrb[0].mxu0 %v49
    %v327 = vpop.f32.mrb[0].mxu0
    %v328 = vadd.f32 0.0, %v327
    %v329 = vpop.f32.mrb[0].mxu0
    %v330 = vpop.f32.mrb[0].mxu0
    %v331 = vadd.f32 0.0, %v330
    %v332 = vpop.f32.mrb[0].mxu0
    %333 = vmatprep.mubr.bf16.mxu0 0
    %334 = vmatmul.mubr.bf16.gmra.mrb[0].mxu0 %v50
    %v335 = vpop.f32.mrb[0].mxu0
    %v336 = vadd.f32 0.0, %v335
    %v337 = vpop.f32.mrb[0].mxu0
    %v338 = vpop.f32.mrb[0].mxu0
    %v339 = vadd.f32 0.0, %v338
    %v340 = vpop.f32.mrb[0].mxu0
    %341 = vmatprep.mubr.bf16.mxu0 0
    %342 = vmatmul.mubr.bf16.gmra.mrb[0].mxu0 %v51
    %v343 = vpop.f32.mrb[0].mxu0
    %v344 = vadd.f32 0.0, %v343
    %v345 = vpop.f32.mrb[0].mxu0
    %v346 = vpop.f32.mrb[0].mxu0
    %v347 = vadd.f32 0.0, %v346
    %v348 = vpop.f32.mrb[0].mxu0
    %349 = vdwg.mxu0
    %v350 = vpack.c.bf16 %v251, %v247
    %v351 = vpack.c.bf16 %v261, %v257
    %v352 = vpack.c.bf16 %v271, %v267
    %v353 = vpack.c.bf16 %v281, %v277
    %v354 = vpack.c.bf16 %v253, %v249
    %v355 = vpack.c.bf16 %v263, %v259
    %v356 = vpack.c.bf16 %v273, %v269
    %v357 = vpack.c.bf16 %v283, %v279
    %358 = vmatprep.subr.bf16.mxu0 0
    %359 = vmatpush1.bf16.xpose.msra.mxu0 %v354
    %360 = vmatprep.subr.bf16.mxu0 0
    %361 = vmatpush1.bf16.xpose.msra.mxu0 %v355
    %362 = vmatprep.subr.bf16.mxu0 0
    %363 = vmatpush1.bf16.xpose.msra.mxu0 0
    %364 = vmatprep.subr.bf16.mxu0 0
    %365 = vmatpush1.bf16.xpose.msra.mxu0 0
    %366 = vmatprep.subr.bf16.mxu0 0
    %367 = vmatpush1.bf16.xpose.msra.mxu0 0
    %368 = vmatprep.subr.bf16.mxu0 0
    %369 = vmatpush1.bf16.xpose.msra.mxu0 0
    %370 = vmatprep.subr.bf16.mxu0 0
    %371 = vmatpush1.bf16.xpose.msra.mxu0 0
    %372 = vmatprep.subr.bf16.mxu0 0
    %373 = vmatpush1.bf16.xpose.msra.mxu0 0
    %374 = vmatprep.subr.bf16.mxu0 0
    %375 = vmatpush1.bf16.xpose.msra.mxu0 0
    %376 = vmatprep.subr.bf16.mxu0 0
    %377 = vmatpush1.bf16.xpose.msra.mxu0 0
    %378 = vmatprep.subr.bf16.mxu0 0
    %379 = vmatpush1.bf16.xpose.msra.mxu0 0
    %380 = vmatprep.subr.bf16.mxu0 0
    %381 = vmatpush1.bf16.xpose.msra.mxu0 0
    %382 = vmatprep.subr.bf16.mxu0 0
    %383 = vmatpush1.bf16.xpose.msra.mxu0 0
    %384 = vmatprep.subr.bf16.mxu0 0
    %385 = vmatpush1.bf16.xpose.msra.mxu0 0
    %386 = vmatprep.subr.bf16.mxu0 0
    %387 = vmatpush1.bf16.xpose.msra.mxu0 0
    %388 = vmatprep.subr.bf16.mxu0 0
    %389 = vmatpush1.bf16.xpose.msra.mxu0 0
    %390 = vmatprep.mubr.bf16.mxu0 0
    %391 = vmatmul.mubr.bf16.gmra.mrb[0].mxu0 %v350
    %v392 = vpop.f32.mrb[0].mxu0
    %v393 = vadd.f32 0.0, %v392
    %v394 = vpop.f32.mrb[0].mxu0
    %v395 = vpop.f32.mrb[0].mxu0
    %v396 = vadd.f32 0.0, %v395
    %v397 = vpop.f32.mrb[0].mxu0
    %398 = vmatprep.mubr.bf16.mxu0 0
    %399 = vmatmul.mubr.bf16.gmra.mrb[0].mxu0 %v351
    %v400 = vpop.f32.mrb[0].mxu0
    %v401 = vadd.f32 0.0, %v400
    %v402 = vpop.f32.mrb[0].mxu0
    %v403 = vpop.f32.mrb[0].mxu0
    %v404 = vadd.f32 0.0, %v403
    %v405 = vpop.f32.mrb[0].mxu0
    %406 = vdwg.mxu0
    %407 = vmatprep.subr.bf16.mxu0 0
    %408 = vmatpush1.bf16.xpose.msra.mxu0 %v356
    %409 = vmatprep.subr.bf16.mxu0 0
    %410 = vmatpush1.bf16.xpose.msra.mxu0 %v357
    %411 = vmatprep.subr.bf16.mxu0 0
    %412 = vmatpush1.bf16.xpose.msra.mxu0 0
    %413 = vmatprep.subr.bf16.mxu0 0
    %414 = vmatpush1.bf16.xpose.msra.mxu0 0
    %415 = vmatprep.subr.bf16.mxu0 0
    %416 = vmatpush1.bf16.xpose.msra.mxu0 0
    %417 = vmatprep.subr.bf16.mxu0 0
    %418 = vmatpush1.bf16.xpose.msra.mxu0 0
    %419 = vmatprep.subr.bf16.mxu0 0
    %420 = vmatpush1.bf16.xpose.msra.mxu0 0
    %421 = vmatprep.subr.bf16.mxu0 0
    %422 = vmatpush1.bf16.xpose.msra.mxu0 0
    %423 = vmatprep.subr.bf16.mxu0 0
    %424 = vmatpush1.bf16.xpose.msra.mxu0 0
    %425 = vmatprep.subr.bf16.mxu0 0
    %426 = vmatpush1.bf16.xpose.msra.mxu0 0
    %427 = vmatprep.subr.bf16.mxu0 0
    %428 = vmatpush1.bf16.xpose.msra.mxu0 0
    %429 = vmatprep.subr.bf16.mxu0 0
    %430 = vmatpush1.bf16.xpose.msra.mxu0 0
    %431 = vmatprep.subr.bf16.mxu0 0
    %432 = vmatpush1.bf16.xpose.msra.mxu0 0
    %433 = vmatprep.subr.bf16.mxu0 0
    %434 = vmatpush1.bf16.xpose.msra.mxu0 0
    %435 = vmatprep.subr.bf16.mxu0 0
    %436 = vmatpush1.bf16.xpose.msra.mxu0 0
    %437 = vmatprep.subr.bf16.mxu0 0
    %438 = vmatpush1.bf16.xpose.msra.mxu0 0
    %439 = vmatprep.mubr.bf16.mxu0 0
    %440 = vmatmul.mubr.bf16.gmra.mrb[0].mxu0 %v352
    %v441 = vpop.f32.mrb[0].mxu0
    %v442 = vadd.f32 0.0, %v441
    %v443 = vpop.f32.mrb[0].mxu0
    %v444 = vpop.f32.mrb[0].mxu0
    %v445 = vadd.f32 0.0, %v444
    %v446 = vpop.f32.mrb[0].mxu0
    %447 = vmatprep.mubr.bf16.mxu0 0
    %448 = vmatmul.mubr.bf16.gmra.mrb[0].mxu0 %v353
    %v449 = vpop.f32.mrb[0].mxu0
    %v450 = vadd.f32 0.0, %v449
    %v451 = vpop.f32.mrb[0].mxu0
    %v452 = vpop.f32.mrb[0].mxu0
    %v453 = vadd.f32 0.0, %v452
    %v454 = vpop.f32.mrb[0].mxu0
    %455 = vdwg.mxu0
    %v456 = vlaneseq
    %v457 = vshrl.u32 %v456, 7
    %v458 = vadd.s32 %v457, 8
    %v459 = vadd.s32 %v457, 16
    %v460 = vadd.s32 %v457, 24
    %v461 = vlaneseq
    %v462 = vand.u32 %v461, 127
    %vm463 = vcmp.le.s32.totalorder %v462, %v457
    %vm464 = vcmp.le.s32.totalorder %v462, %v458
    %vm465 = vcmp.le.s32.totalorder %v462, %v459
    %vm466 = vcmp.le.s32.totalorder %v462, %v460
    %v467 = vsel %vm463, %v393, -1e+30
    %v468 = vsel %vm464, %v396, -1e+30
    %v469 = vsel %vm465, %v401, -1e+30
    %v470 = vsel %vm466, %v404, -1e+30
    %v471 = vsel %vm463, %v442, -1e+30
    %v472 = vsel %vm464, %v445, -1e+30
    %v473 = vsel %vm465, %v450, -1e+30
    %v474 = vsel %vm466, %v453, -1e+30
    %vm475 = vcmask 261120
    %v476 = vsel %vm475, %v467, -inf
    %477 = vmax.xlane.f32.xlu0 %v476
    %v478 = vpop.xlane.xlu0 %477
    %v479 = vsel %vm475, %v468, -inf
    %480 = vmax.xlane.f32.xlu0 %v479
    %v481 = vpop.xlane.xlu0 %480
    %v482 = vsel %vm475, %v469, -inf
    %483 = vmax.xlane.f32.xlu0 %v482
    %v484 = vpop.xlane.xlu0 %483
    %v485 = vsel %vm475, %v470, -inf
    %486 = vmax.xlane.f32.xlu0 %v485
    %v487 = vpop.xlane.xlu0 %486
    %v488 = vsel %vm475, %v471, -inf
    %489 = vmax.xlane.f32.xlu0 %v488
    %v490 = vpop.xlane.xlu0 %489
    %v491 = vsel %vm475, %v472, -inf
    %492 = vmax.xlane.f32.xlu0 %v491
    %v493 = vpop.xlane.xlu0 %492
    %v494 = vsel %vm475, %v473, -inf
    %495 = vmax.xlane.f32.xlu0 %v494
    %v496 = vpop.xlane.xlu0 %495
    %v497 = vsel %vm475, %v474, -inf
    %498 = vmax.xlane.f32.xlu0 %v497
    %v499 = vpop.xlane.xlu0 %498
    %v500 = vsub.f32 %v467, %v478
    %v501 = vsub.f32 %v468, %v481
    %v502 = vsub.f32 %v469, %v484
    %v503 = vsub.f32 %v470, %v487
    %v504 = vsub.f32 %v471, %v490
    %v505 = vsub.f32 %v472, %v493
    %v506 = vsub.f32 %v473, %v496
    %v507 = vsub.f32 %v474, %v499
    %v508 = vmul.f32 %v500, 1.442695
    %v509 = vpow.pop %v508
    %v510 = vmul.f32 %v501, 1.442695
    %v511 = vpow.pop %v510
    %v512 = vmul.f32 %v502, 1.442695
    %v513 = vpow.pop %v512
    %v514 = vmul.f32 %v503, 1.442695
    %v515 = vpow.pop %v514
    %v516 = vmul.f32 %v504, 1.442695
    %v517 = vpow.pop %v516
    %v518 = vmul.f32 %v505, 1.442695
    %v519 = vpow.pop %v518
    %v520 = vmul.f32 %v506, 1.442695
    %v521 = vpow.pop %v520
    %v522 = vmul.f32 %v507, 1.442695
    %v523 = vpow.pop %v522
    %v524 = vsel %vm475, %v509, 0.0
    %525 = vadd.xlane.f32.xlu0 %v524
    %v526 = vpop.xlane.xlu0 %525
    %v527 = vsel %vm475, %v511, 0.0
    %528 = vadd.xlane.f32.xlu0 %v527
    %v529 = vpop.xlane.xlu0 %528
    %v530 = vsel %vm475, %v513, 0.0
    %531 = vadd.xlane.f32.xlu0 %v530
    %v532 = vpop.xlane.xlu0 %531
    %v533 = vsel %vm475, %v515, 0.0
    %534 = vadd.xlane.f32.xlu0 %v533
    %v535 = vpop.xlane.xlu0 %534
    %v536 = vsel %vm475, %v517, 0.0
    %537 = vadd.xlane.f32.xlu0 %v536
    %v538 = vpop.xlane.xlu0 %537
    %v539 = vsel %vm475, %v519, 0.0
    %540 = vadd.xlane.f32.xlu0 %v539
    %v541 = vpop.xlane.xlu0 %540
    %v542 = vsel %vm475, %v521, 0.0
    %543 = vadd.xlane.f32.xlu0 %v542
    %v544 = vpop.xlane.xlu0 %543
    %v545 = vsel %vm475, %v523, 0.0
    %546 = vadd.xlane.f32.xlu0 %v545
    %v547 = vpop.xlane.xlu0 %546
    %v548 = vrcp.pop %v526
    %v549 = vrcp.pop %v529
    %v550 = vrcp.pop %v532
    %v551 = vrcp.pop %v535
    %v552 = vrcp.pop %v538
    %v553 = vrcp.pop %v541
    %v554 = vrcp.pop %v544
    %v555 = vrcp.pop %v547
    %v556 = vmul.f32 %v509, %v548
    %v557 = vmul.f32 %v511, %v549
    %v558 = vmul.f32 %v513, %v550
    %v559 = vmul.f32 %v515, %v551
    %v560 = vmul.f32 %v517, %v552
    %v561 = vmul.f32 %v519, %v553
    %v562 = vmul.f32 %v521, %v554
    %v563 = vmul.f32 %v523, %v555
    %v564 = vpack.c.bf16 %v557, %v556
    %v565 = vpack.c.bf16 %v559, %v558
    %v566 = vpack.c.bf16 %v561, %v560
    %v567 = vpack.c.bf16 %v563, %v562
    %v568 = vpack.c.bf16 %v323, %v320
    %v569 = vpack.c.bf16 %v331, %v328
    %v570 = vpack.c.bf16 %v339, %v336
    %v571 = vpack.c.bf16 %v347, %v344
    %v573 = vsel %vm475, %v564, 0
    %v576 = vsel %vm475, %v565, 0
    %578 = vmatprep.subr.bf16.mxu0 0
    %579 = vmatpush1.bf16.msra.mxu0 %v568
    %580 = vmatprep.subr.bf16.mxu0 0
    %581 = vmatpush1.bf16.msra.mxu0 %v569
    %582 = vmatprep.subr.bf16.mxu0 0
    %583 = vmatpush1.bf16.msra.mxu0 0
    %584 = vmatprep.subr.bf16.mxu0 0
    %585 = vmatpush1.bf16.msra.mxu0 0
    %586 = vmatprep.subr.bf16.mxu0 0
    %587 = vmatpush1.bf16.msra.mxu0 0
    %588 = vmatprep.subr.bf16.mxu0 0
    %589 = vmatpush1.bf16.msra.mxu0 0
    %590 = vmatprep.subr.bf16.mxu0 0
    %591 = vmatpush1.bf16.msra.mxu0 0
    %592 = vmatprep.subr.bf16.mxu0 0
    %593 = vmatpush1.bf16.msra.mxu0 0
    %594 = vmatprep.subr.bf16.mxu0 0
    %595 = vmatpush1.bf16.msra.mxu0 0
    %596 = vmatprep.subr.bf16.mxu0 0
    %597 = vmatpush1.bf16.msra.mxu0 0
    %598 = vmatprep.subr.bf16.mxu0 0
    %599 = vmatpush1.bf16.msra.mxu0 0
    %600 = vmatprep.subr.bf16.mxu0 0
    %601 = vmatpush1.bf16.msra.mxu0 0
    %602 = vmatprep.subr.bf16.mxu0 0
    %603 = vmatpush1.bf16.msra.mxu0 0
    %604 = vmatprep.subr.bf16.mxu0 0
    %605 = vmatpush1.bf16.msra.mxu0 0
    %606 = vmatprep.subr.bf16.mxu0 0
    %607 = vmatpush1.bf16.msra.mxu0 0
    %608 = vmatprep.subr.bf16.mxu0 0
    %609 = vmatpush1.bf16.msra.mxu0 0
    %610 = vmatprep.mubr.bf16.mxu0 0
    %611 = vmatmul.mubr.bf16.gmra.mrb[0].mxu0 %v573
    %v612 = vpop.f32.mrb[0].mxu0
    %v613 = vadd.f32 0.0, %v612
    %v614 = vpop.f32.mrb[0].mxu0
    %v615 = vpop.f32.mrb[0].mxu0
    %v616 = vadd.f32 0.0, %v615
    %v617 = vpop.f32.mrb[0].mxu0
    %618 = vmatprep.mubr.bf16.mxu0 0
    %619 = vmatmul.mubr.bf16.gmra.mrb[0].mxu0 %v576
    %v620 = vpop.f32.mrb[0].mxu0
    %v621 = vadd.f32 0.0, %v620
    %v622 = vpop.f32.mrb[0].mxu0
    %v623 = vpop.f32.mrb[0].mxu0
    %v624 = vadd.f32 0.0, %v623
    %v625 = vpop.f32.mrb[0].mxu0
    %626 = vdwg.mxu0
    %v628 = vsel %vm475, %v566, 0
    %v631 = vsel %vm475, %v567, 0
    %633 = vmatprep.subr.bf16.mxu0 0
    %634 = vmatpush1.bf16.msra.mxu0 %v570
    %635 = vmatprep.subr.bf16.mxu0 0
    %636 = vmatpush1.bf16.msra.mxu0 %v571
    %637 = vmatprep.subr.bf16.mxu0 0
    %638 = vmatpush1.bf16.msra.mxu0 0
    %639 = vmatprep.subr.bf16.mxu0 0
    %640 = vmatpush1.bf16.msra.mxu0 0
    %641 = vmatprep.subr.bf16.mxu0 0
    %642 = vmatpush1.bf16.msra.mxu0 0
    %643 = vmatprep.subr.bf16.mxu0 0
    %644 = vmatpush1.bf16.msra.mxu0 0
    %645 = vmatprep.subr.bf16.mxu0 0
    %646 = vmatpush1.bf16.msra.mxu0 0
    %647 = vmatprep.subr.bf16.mxu0 0
    %648 = vmatpush1.bf16.msra.mxu0 0
    %649 = vmatprep.subr.bf16.mxu0 0
    %650 = vmatpush1.bf16.msra.mxu0 0
    %651 = vmatprep.subr.bf16.mxu0 0
    %652 = vmatpush1.bf16.msra.mxu0 0
    %653 = vmatprep.subr.bf16.mxu0 0
    %654 = vmatpush1.bf16.msra.mxu0 0
    %655 = vmatprep.subr.bf16.mxu0 0
    %656 = vmatpush1.bf16.msra.mxu0 0
    %657 = vmatprep.subr.bf16.mxu0 0
    %658 = vmatpush1.bf16.msra.mxu0 0
    %659 = vmatprep.subr.bf16.mxu0 0
    %660 = vmatpush1.bf16.msra.mxu0 0
    %661 = vmatprep.subr.bf16.mxu0 0
    %662 = vmatpush1.bf16.msra.mxu0 0
    %663 = vmatprep.subr.bf16.mxu0 0
    %664 = vmatpush1.bf16.msra.mxu0 0
    %665 = vmatprep.mubr.bf16.mxu0 0
    %666 = vmatmul.mubr.bf16.gmra.mrb[0].mxu0 %v628
    %v667 = vpop.f32.mrb[0].mxu0
    %v668 = vadd.f32 0.0, %v667
    %v669 = vpop.f32.mrb[0].mxu0
    %v670 = vpop.f32.mrb[0].mxu0
    %v671 = vadd.f32 0.0, %v670
    %v672 = vpop.f32.mrb[0].mxu0
    %673 = vmatprep.mubr.bf16.mxu0 0
    %674 = vmatmul.mubr.bf16.gmra.mrb[0].mxu0 %v631
    %v675 = vpop.f32.mrb[0].mxu0
    %v676 = vadd.f32 0.0, %v675
    %v677 = vpop.f32.mrb[0].mxu0
    %v678 = vpop.f32.mrb[0].mxu0
    %v679 = vadd.f32 0.0, %v678
    %v680 = vpop.f32.mrb[0].mxu0
    %681 = vdwg.mxu0
    %vm682 = vcmask 130048
    %683 = vst.msk [vmem:[%s2] sm:$0xff] %vm682, %v613
    %684 = vst.msk [vmem:[%s2 + $0x8] sm:$0xff] %vm682, %v616
    %685 = vst.msk [vmem:[%s2 + $0x10] sm:$0xff] %vm682, %v621
    %686 = vst.msk [vmem:[%s2 + $0x18] sm:$0xff] %vm682, %v624
    %687 = vst.msk [vmem:[%s2 + $0x20] sm:$0xff] %vm682, %v668
    %688 = vst.msk [vmem:[%s2 + $0x28] sm:$0xff] %vm682, %v671
    %689 = vst.msk [vmem:[%s2 + $0x30] sm:$0xff] %vm682, %v676
    %690 = vst.msk [vmem:[%s2 + $0x38] sm:$0xff] %vm682, %v679
    // Predicated region
    $region18: #{tpu_custom_call.1} parent=1 // pred_check
      _
    $region19: #{tpu_custom_call.1} parent=1 // pred_check_branch
      %692 = sbr.rel (0) target = $region21
    $region20: #{tpu_custom_call.1} parent=1 // pred_region
      _
    $region21: #{tpu_custom_call.1} parent=1 // pred_fallthru
      _
    // Predicated region
    $region22: #{tpu_custom_call.1} parent=1 // pred_check
      _
    $region23: #{tpu_custom_call.1} parent=1 // pred_check_branch
      %694 = sbr.rel (0) target = $region25
    $region24: #{tpu_custom_call.1} parent=1 // pred_region
      _
    $region25: #{tpu_custom_call.1} parent=1 // pred_fallthru
      _
    %695 = vsyncpa [#allocation3], 1
    %696 = vsyncpa [#allocation5], 1

</llo_original>
